<compile_context>
chip_gen: v7x
topology: tpu7x:2x2x1
jax: 0.10.0
libtpu: 0.0.40
codegen_flags: <defaults>
</compile_context>

<pallas_src>
import functools

import jax
import jax.numpy as jnp
from jax.experimental import pallas as pl
from jax.experimental.pallas import tpu as pltpu

EPS = 1e-5  # PyTorch BatchNorm1d default eps


def nfm_kernel(slab_ref, w1t_ref, b1_ref, w2t_ref, b2_ref, w3_ref, out_ref,
               *, n_fields, n_factors):
    """One batch tile, transposed layout (features on sublanes, batch on lanes).

    slab_ref : (F*K + 1, TB)  rows [f*K, (f+1)*K) are field f's embedding,
               row F*K is the precomputed linear term (+ biases).
    w1t_ref  : (H1, K)   BN0/BN1-folded first layer, pre-transposed
    b1_ref   : (H1, 1)
    w2t_ref  : (H2, H1)  BN2-folded second layer, pre-transposed
    b2_ref   : (H2, 1)
    w3_ref   : (H2, 1)   output projection column
    out_ref  : (1, TB)   sigmoid(lin + mlp)
    """
    K = n_factors
    F = n_fields

    # --- FactorizationMachine (reduce_sum=False), fields are static sublane slices.
    s = slab_ref[0:K, :]                     # (K, TB)
    sq = s * s
    for f in range(1, F):
        c = slab_ref[f * K:(f + 1) * K, :]
        s = s + c
        sq = sq + c * c
    cross = 0.5 * (s * s - sq)               # (K, TB); BN0 already folded into w1

    # --- MLP (BatchNorms folded into weights/biases; Dropout = identity at eval).
    h = jnp.dot(w1t_ref[...], cross, preferred_element_type=jnp.float32) + b1_ref[...]
    h = jnp.maximum(h, 0.0)                  # (H1, TB)
    h = jnp.dot(w2t_ref[...], h, preferred_element_type=jnp.float32) + b2_ref[...]
    h = jnp.maximum(h, 0.0)                  # (H2, TB)

    # Final (H2 -> 1) matvec on VPU + sublane reduction (keeps the MXU free).
    y = jnp.sum(h * w3_ref[...], axis=0, keepdims=True)        # (1, TB)

    # FeaturesLinear term (already includes lin bias + final MLP bias).
    lin = slab_ref[F * K:F * K + 1, :]                          # (1, TB)

    out_ref[...] = jax.nn.sigmoid(lin + y)                      # lane-dense store


def fold_params(p):
    """Fold eval-mode BatchNorms into adjacent Linear weights/biases (host-side)."""
    # BN0 (on the FM output) folded into Linear1's input side.
    s0 = (p["bn0_g"] / jnp.sqrt(p["bn0_v"] + EPS)).reshape(-1)           # (K,)
    b0 = p["bn0_b"].reshape(-1)
    m0 = p["bn0_m"].reshape(-1)
    w1a = s0[:, None] * p["w1"]                                          # (K, H1)
    b1a = (b0 - m0 * s0) @ p["w1"] + p["b1"].reshape(-1)                 # (H1,)
    # BN1 folded into Linear1's output side.
    s1 = (p["bn1_g"] / jnp.sqrt(p["bn1_v"] + EPS)).reshape(-1)           # (H1,)
    w1f = w1a * s1[None, :]
    b1f = (b1a - p["bn1_m"].reshape(-1)) * s1 + p["bn1_b"].reshape(-1)
    # BN2 folded into Linear2's output side.
    s2 = (p["bn2_g"] / jnp.sqrt(p["bn2_v"] + EPS)).reshape(-1)           # (H2,)
    w2f = p["w2"] * s2[None, :]
    b2f = (p["b2"].reshape(-1) - p["bn2_m"].reshape(-1)) * s2 + p["bn2_b"].reshape(-1)
    return {
        "w1t": jnp.asarray(w1f.T, jnp.float32),          # (H1, K)
        "b1c": jnp.asarray(b1f[:, None], jnp.float32),   # (H1, 1)
        "w2t": jnp.asarray(w2f.T, jnp.float32),          # (H2, H1)
        "b2c": jnp.asarray(b2f[:, None], jnp.float32),   # (H2, 1)
        "w3c": jnp.asarray(p["w3"], jnp.float32),        # (H2, 1)
        # lin bias + final MLP bias folded into the glue-side linear term.
        "bias": p["lin_bias"].reshape(()) + p["b3"].reshape(()),
    }


def nfm_pallas(params, users_feat, items_feat, *, tb=128):
    """NFM forward. `tb` is the per-step batch tile (lane width); keep it a
    multiple of 128 and sized for the smallest target VMEM (v7x: 64 MiB)."""
    folded = fold_params(params)

    # --- glue: concat fields, gather embeddings, pack lane-dense slab (XLA-fused).
    x = jnp.concatenate([users_feat, items_feat], axis=1).astype(jnp.int32)  # (B, F)
    B, F = x.shape
    K = params["emb_table"].shape[1]
    idx = x + params["offsets"][None, :]                                     # (B, F)
    emb = params["emb_table"][idx]                                           # (B, F, K)
    lin = jnp.sum(params["lin_table"][idx], axis=1) + folded["bias"]         # (B,)

    slab = jnp.concatenate([emb.reshape(B, F * K), lin[:, None]], axis=1)    # (B, F*K+1)
    slab_t = slab.T                                                          # (F*K+1, B)

    bp = int(pl.cdiv(B, tb)) * tb
    if bp != B:
        slab_t = jnp.pad(slab_t, ((0, 0), (0, bp - B)))                      # zero pad tail

    fk1 = F * K + 1
    h1 = folded["w1t"].shape[0]
    h2 = folded["w2t"].shape[0]

    kernel = functools.partial(nfm_kernel, n_fields=F, n_factors=K)
    out = pl.pallas_call(
        kernel,
        out_shape=jax.ShapeDtypeStruct((1, bp), jnp.float32),
        grid=(bp // tb,),
        in_specs=[
            pl.BlockSpec((fk1, tb), lambda i: (0, i)),     # batch-tiled slab
            pl.BlockSpec((h1, K), lambda i: (0, 0)),       # weights: constant index
            pl.BlockSpec((h1, 1), lambda i: (0, 0)),       #   maps -> stay resident
            pl.BlockSpec((h2, h1), lambda i: (0, 0)),
            pl.BlockSpec((h2, 1), lambda i: (0, 0)),
            pl.BlockSpec((h2, 1), lambda i: (0, 0)),
        ],
        out_specs=pl.BlockSpec((1, tb), lambda i: (0, i)),
        compiler_params=pltpu.CompilerParams(
            dimension_semantics=("parallel",),             # megacore on v7x
        ),
    )(slab_t, folded["w1t"], folded["b1c"], folded["w2t"], folded["b2c"], folded["w3c"])

    return out[0, :B]                                      # drop padding, .squeeze(1)


def nfm_reference(params, users_feat, items_feat):
    """Pure-JAX reference, mirrors the PyTorch eval-mode forward (no folding)."""
    x = jnp.concatenate([users_feat, items_feat], axis=1)
    idx = x + params["offsets"][None, :]
    emb = params["emb_table"][idx]
    sum_emb = jnp.sum(emb, axis=1)
    sum_sq = jnp.sum(emb * emb, axis=1)
    cross = 0.5 * (sum_emb ** 2 - sum_sq)
    h = (cross - params["bn0_m"]) / jnp.sqrt(params["bn0_v"] + EPS) * params["bn0_g"] + params["bn0_b"]
    h = h @ params["w1"] + params["b1"]
    h = (h - params["bn1_m"]) / jnp.sqrt(params["bn1_v"] + EPS) * params["bn1_g"] + params["bn1_b"]
    h = jnp.maximum(h, 0.0)
    h = h @ params["w2"] + params["b2"]
    h = (h - params["bn2_m"]) / jnp.sqrt(params["bn2_v"] + EPS) * params["bn2_g"] + params["bn2_b"]
    h = jnp.maximum(h, 0.0)
    y = h @ params["w3"] + params["b3"]
    lin = jnp.sum(params["lin_table"][idx], axis=1, keepdims=True) + params["lin_bias"]
    return jax.nn.sigmoid(lin + y)[:, 0]


def init_params(key, field_dims, n_factors, mlp_dims):
    total = int(sum(field_dims))
    offsets = jnp.asarray(
        [0] + list(jnp.cumsum(jnp.asarray(field_dims[:-1], jnp.int32)).tolist()),
        jnp.int32,
    )
    keys = jax.random.split(key, 16)
    h1, h2 = mlp_dims
    k = n_factors
    xav_std = (2.0 / (total + k)) ** 0.5   # xavier_normal_ std for the embedding
    p = {
        "offsets": offsets,
        "emb_table": jax.random.normal(keys[0], (total, k), jnp.float32) * xav_std,
        "lin_table": jax.random.normal(keys[1], (total,), jnp.float32) * 0.1,
        "lin_bias": jnp.zeros((1, 1), jnp.float32),
        # BatchNorm1d(n_factors) running stats / affine params (eval mode)
        "bn0_g": 1.0 + 0.05 * jax.random.normal(keys[2], (1, k), jnp.float32),
        "bn0_b": 0.05 * jax.random.normal(keys[3], (1, k), jnp.float32),
        "bn0_m": 0.05 * jax.random.normal(keys[4], (1, k), jnp.float32),
        "bn0_v": 0.5 + jax.random.uniform(keys[5], (1, k), jnp.float32),
        # MLP layer 1
        "w1": jax.random.normal(keys[6], (k, h1), jnp.float32) * (1.0 / k) ** 0.5,
        "b1": 0.05 * jax.random.normal(keys[7], (1, h1), jnp.float32),
        "bn1_g": 1.0 + 0.05 * jax.random.normal(keys[8], (1, h1), jnp.float32),
        "bn1_b": 0.05 * jax.random.normal(keys[9], (1, h1), jnp.float32),
        "bn1_m": 0.05 * jax.random.normal(keys[10], (1, h1), jnp.float32),
        "bn1_v": 0.5 + jax.random.uniform(keys[11], (1, h1), jnp.float32),
        # MLP layer 2
        "w2": jax.random.normal(keys[12], (h1, h2), jnp.float32) * (1.0 / h1) ** 0.5,
        "b2": 0.05 * jax.random.normal(keys[13], (1, h2), jnp.float32),
        "bn2_g": jnp.ones((1, h2), jnp.float32),
        "bn2_b": jnp.zeros((1, h2), jnp.float32),
        "bn2_m": jnp.zeros((1, h2), jnp.float32),
        "bn2_v": jnp.ones((1, h2), jnp.float32),
        # MLP output layer
        "w3": jax.random.normal(keys[14], (h2, 1), jnp.float32) * (1.0 / h2) ** 0.5,
        "b3": 0.05 * jax.random.normal(keys[15], (1, 1), jnp.float32),
    }
    return p


if __name__ == "__main__":
    key = jax.random.PRNGKey(0)
    user_field_dims = [10, 8]
    item_field_dims = [12, 6]
    field_dims = user_field_dims + item_field_dims
    n_factors = 16          # keep a multiple of 8 (field slices land on sublane tiles)
    mlp_dims = (32, 16)
    B = 8

    params = init_params(key, field_dims, n_factors, mlp_dims)

    k_u, k_i = jax.random.split(jax.random.PRNGKey(0), 2)
    users_feat = jnp.stack(
        [jax.random.randint(jax.random.fold_in(k_u, j), (B,), 0, d, jnp.int32)
         for j, d in enumerate(user_field_dims)], axis=1)
    items_feat = jnp.stack(
        [jax.random.randint(jax.random.fold_in(k_i, j), (B,), 0, d, jnp.int32)
         for j, d in enumerate(item_field_dims)], axis=1)

    out = nfm_pallas(params, users_feat, items_feat, tb=128)
    out = jax.block_until_ready(out)

    ref = nfm_reference(params, users_feat, items_feat)
    assert out.shape == (B,)
    assert jnp.allclose(out, ref, atol=1e-5, rtol=1e-5), (out, ref)
    print("KERNEL_OK")
</pallas_src>

<mosaic_0001>
module attributes {stable_mosaic.version = 11 : i64} {
  func.func @nfm_kernel(%arg0: i32, %arg1: memref<65x128xf32, #tpu.memory_space<vmem>>, %arg2: memref<32x16xf32, #tpu.memory_space<vmem>>, %arg3: memref<32x1xf32, #tpu.memory_space<vmem>>, %arg4: memref<16x32xf32, #tpu.memory_space<vmem>>, %arg5: memref<16x1xf32, #tpu.memory_space<vmem>>, %arg6: memref<16x1xf32, #tpu.memory_space<vmem>>, %arg7: memref<1x128xf32, #tpu.memory_space<vmem>>) attributes {dimension_semantics = [#tpu.dimension_semantics<parallel>], iteration_bounds = array<i64: 1>, scalar_prefetch = 0 : i64, scratch_operands = 0 : i64, tpu.core_type = #tpu.core_type<tc>, window_params = [{transform_indices = @transform_0, window_bounds = array<i64: 65, 128>}, {pipeline_mode = #tpu.pipeline_mode<synchronous>, transform_indices = @transform_1, window_bounds = array<i64: 32, 16>}, {pipeline_mode = #tpu.pipeline_mode<synchronous>, transform_indices = @transform_2, window_bounds = array<i64: 32, 1>}, {pipeline_mode = #tpu.pipeline_mode<synchronous>, transform_indices = @transform_3, window_bounds = array<i64: 16, 32>}, {pipeline_mode = #tpu.pipeline_mode<synchronous>, transform_indices = @transform_4, window_bounds = array<i64: 16, 1>}, {pipeline_mode = #tpu.pipeline_mode<synchronous>, transform_indices = @transform_5, window_bounds = array<i64: 16, 1>}, {transform_indices = @transform_6, window_bounds = array<i64: 1, 128>}]} {
    %c0 = arith.constant 0 : index
    %c0_0 = arith.constant 0 : index
    %0 = vector.load %arg1[%c0, %c0_0] : memref<65x128xf32, #tpu.memory_space<vmem>>, vector<16x128xf32>
    %1 = arith.mulf %0, %0 : vector<16x128xf32>
    %c16 = arith.constant 16 : index
    %c0_1 = arith.constant 0 : index
    %2 = vector.load %arg1[%c16, %c0_1] : memref<65x128xf32, #tpu.memory_space<vmem>>, vector<16x128xf32>
    %3 = arith.addf %0, %2 : vector<16x128xf32>
    %4 = arith.mulf %2, %2 : vector<16x128xf32>
    %5 = arith.addf %1, %4 : vector<16x128xf32>
    %c32 = arith.constant 32 : index
    %c0_2 = arith.constant 0 : index
    %6 = vector.load %arg1[%c32, %c0_2] : memref<65x128xf32, #tpu.memory_space<vmem>>, vector<16x128xf32>
    %7 = arith.addf %3, %6 : vector<16x128xf32>
    %8 = arith.mulf %6, %6 : vector<16x128xf32>
    %9 = arith.addf %5, %8 : vector<16x128xf32>
    %c48 = arith.constant 48 : index
    %c0_3 = arith.constant 0 : index
    %10 = vector.load %arg1[%c48, %c0_3] : memref<65x128xf32, #tpu.memory_space<vmem>>, vector<16x128xf32>
    %11 = arith.addf %7, %10 : vector<16x128xf32>
    %12 = arith.mulf %10, %10 : vector<16x128xf32>
    %13 = arith.addf %9, %12 : vector<16x128xf32>
    %14 = arith.mulf %11, %11 : vector<16x128xf32>
    %15 = arith.subf %14, %13 : vector<16x128xf32>
    %cst = arith.constant 5.000000e-01 : f32
    %16 = vector.broadcast %cst : f32 to vector<16x128xf32>
    %17 = arith.mulf %16, %15 : vector<16x128xf32>
    %c0_4 = arith.constant 0 : index
    %c0_5 = arith.constant 0 : index
    %18 = vector.load %arg2[%c0_4, %c0_5] : memref<32x16xf32, #tpu.memory_space<vmem>>, vector<32x16xf32>
    %cst_6 = arith.constant dense<0.000000e+00> : vector<32x128xf32>
    %19 = tpu.matmul %18, %17, %cst_6 {dimension_numbers = #tpu.dot_dimension_numbers<[1], [0], [0], [1], [0, 0, 1, 1], [], []>} : vector<32x16xf32>, vector<16x128xf32>, vector<32x128xf32> -> vector<32x128xf32>
    %c0_7 = arith.constant 0 : index
    %c0_8 = arith.constant 0 : index
    %20 = vector.load %arg3[%c0_7, %c0_8] : memref<32x1xf32, #tpu.memory_space<vmem>>, vector<32x1xf32>
    %21 = vector.broadcast %20 : vector<32x1xf32> to vector<32x128xf32>
    %22 = arith.addf %19, %21 : vector<32x128xf32>
    %cst_9 = arith.constant 0.000000e+00 : f32
    %23 = vector.broadcast %cst_9 : f32 to vector<32x128xf32>
    %24 = arith.maximumf %22, %23 : vector<32x128xf32>
    %c0_10 = arith.constant 0 : index
    %c0_11 = arith.constant 0 : index
    %25 = vector.load %arg4[%c0_10, %c0_11] : memref<16x32xf32, #tpu.memory_space<vmem>>, vector<16x32xf32>
    %cst_12 = arith.constant dense<0.000000e+00> : vector<16x128xf32>
    %26 = tpu.matmul %25, %24, %cst_12 {dimension_numbers = #tpu.dot_dimension_numbers<[1], [0], [0], [1], [0, 0, 1, 1], [], []>} : vector<16x32xf32>, vector<32x128xf32>, vector<16x128xf32> -> vector<16x128xf32>
    %c0_13 = arith.constant 0 : index
    %c0_14 = arith.constant 0 : index
    %27 = vector.load %arg5[%c0_13, %c0_14] : memref<16x1xf32, #tpu.memory_space<vmem>>, vector<16x1xf32>
    %28 = vector.broadcast %27 : vector<16x1xf32> to vector<16x128xf32>
    %29 = arith.addf %26, %28 : vector<16x128xf32>
    %cst_15 = arith.constant 0.000000e+00 : f32
    %30 = vector.broadcast %cst_15 : f32 to vector<16x128xf32>
    %31 = arith.maximumf %29, %30 : vector<16x128xf32>
    %c0_16 = arith.constant 0 : index
    %c0_17 = arith.constant 0 : index
    %32 = vector.load %arg6[%c0_16, %c0_17] : memref<16x1xf32, #tpu.memory_space<vmem>>, vector<16x1xf32>
    %33 = vector.broadcast %32 : vector<16x1xf32> to vector<16x128xf32>
    %34 = arith.mulf %31, %33 : vector<16x128xf32>
    %cst_18 = arith.constant dense<0.000000e+00> : vector<128xf32>
    %35 = vector.multi_reduction <add>, %34, %cst_18 [0] : vector<16x128xf32> to vector<128xf32>
    %36 = vector.shape_cast %35 : vector<128xf32> to vector<1x128xf32>
    %c64 = arith.constant 64 : index
    %c0_19 = arith.constant 0 : index
    %37 = vector.load %arg1[%c64, %c0_19] : memref<65x128xf32, #tpu.memory_space<vmem>>, vector<1x128xf32>
    %38 = arith.addf %37, %36 : vector<1x128xf32>
    %39 = arith.negf %38 : vector<1x128xf32>
    %40 = math.exp %39 : vector<1x128xf32>
    %cst_20 = arith.constant 1.000000e+00 : f32
    %41 = vector.broadcast %cst_20 : f32 to vector<1x128xf32>
    %42 = arith.addf %41, %40 : vector<1x128xf32>
    %43 = arith.divf %41, %42 : vector<1x128xf32>
    %c0_21 = arith.constant 0 : index
    %c0_22 = arith.constant 0 : index
    %44 = vector.load %arg7[%c0_21, %c0_22] : memref<1x128xf32, #tpu.memory_space<vmem>>, vector<1x128xf32>
    tpu.vector_store %arg7[%c0_21, %c0_22], %43 {strides = array<i32>} : memref<1x128xf32, #tpu.memory_space<vmem>>, vector<1x128xf32>,
    return
  }
  func.func @transform_0(%arg0: i32) -> (i32, i32) {
    %c0_i32 = arith.constant 0 : i32
    %c0_i32_0 = arith.constant 0 : i32
    return %c0_i32, %arg0 : i32, i32
  }
  func.func @transform_1(%arg0: i32) -> (i32, i32) {
    %c0_i32 = arith.constant 0 : i32
    %c0_i32_0 = arith.constant 0 : i32
    %c0_i32_1 = arith.constant 0 : i32
    return %c0_i32, %c0_i32_0 : i32, i32
  }
  func.func @transform_2(%arg0: i32) -> (i32, i32) {
    %c0_i32 = arith.constant 0 : i32
    %c0_i32_0 = arith.constant 0 : i32
    %c0_i32_1 = arith.constant 0 : i32
    return %c0_i32, %c0_i32_0 : i32, i32
  }
  func.func @transform_3(%arg0: i32) -> (i32, i32) {
    %c0_i32 = arith.constant 0 : i32
    %c0_i32_0 = arith.constant 0 : i32
    %c0_i32_1 = arith.constant 0 : i32
    return %c0_i32, %c0_i32_0 : i32, i32
  }
  func.func @transform_4(%arg0: i32) -> (i32, i32) {
    %c0_i32 = arith.constant 0 : i32
    %c0_i32_0 = arith.constant 0 : i32
    %c0_i32_1 = arith.constant 0 : i32
    return %c0_i32, %c0_i32_0 : i32, i32
  }
  func.func @transform_5(%arg0: i32) -> (i32, i32) {
    %c0_i32 = arith.constant 0 : i32
    %c0_i32_0 = arith.constant 0 : i32
    %c0_i32_1 = arith.constant 0 : i32
    return %c0_i32, %c0_i32_0 : i32, i32
  }
  func.func @transform_6(%arg0: i32) -> (i32, i32) {
    %c0_i32 = arith.constant 0 : i32
    %c0_i32_0 = arith.constant 0 : i32
    return %c0_i32, %arg0 : i32, i32
  }
}

</mosaic_0001>

<llo_original>
// kernel: tpu_custom_call.1
$region0: #{tpu_custom_call.1}
  #allocation0 [shape = 'u32[]', space=smem, size = 0x4, offset = 0x4, fixed_abs, tag = 'smem constant byte address 0x4 - core index']
  #allocation1 [shape = 'u32[144,128]{1,0:T(1,128)}', space=vmem, size = 0x12000, scoped, tag = 'internal scratch']
  %s0 = inlined_call_operand.vmem [shape: f32[65,128], index: 0, kind: input, shape index: {}]
  %s1 = inlined_call_operand.vmem [shape: f32[32,16], index: 1, kind: input, shape index: {}]
  %s2 = inlined_call_operand.vmem [shape: f32[32,1], index: 2, kind: input, shape index: {}]
  %s3 = inlined_call_operand.vmem [shape: f32[16,32], index: 3, kind: input, shape index: {}]
  %s4 = inlined_call_operand.vmem [shape: f32[16,1], index: 4, kind: input, shape index: {}]
  %s5 = inlined_call_operand.vmem [shape: f32[16,1], index: 5, kind: input, shape index: {}]
  %s6 = inlined_call_operand.hbm [shape: f32[1,128], index: 6, kind: output, shape index: {}]
  %s7 = sld [smem:[#allocation0]]
  $region34: #{tpu_custom_call.1} parent=0
    _
  %s9 = ssub.s32 1, %s7
  %s10 = scalar_select 0, %s9, %s7
  $region1: #{tpu_custom_call.1} parent=0
    #allocation2 [shape = 'u8[512]{0}', space=vmem, size = 0x400, scoped, tag = 'output window, operand 0, single buffered']
    #allocation3 [shape = 's32[1]{0}', space=sflag, size = 0x4, scoped, tag = 'scoped memory for tpu_custom_call.1']
    %11 = vsyncpa [#allocation3], 0
    // Predicated region
    $region2: #{tpu_custom_call.1} parent=1 // pred_check
      _
    $region3: #{tpu_custom_call.1} parent=1 // pred_check_branch
      %13 = sbr.rel (0) target = $region5
    $region4: #{tpu_custom_call.1} parent=1 // pred_region
      _
    $region5: #{tpu_custom_call.1} parent=1 // pred_fallthru
      _
    // Predicated region
    $region6: #{tpu_custom_call.1} parent=1 // pred_check
      _
    $region7: #{tpu_custom_call.1} parent=1 // pred_check_branch
      %15 = sbr.rel (0) target = $region9
    $region8: #{tpu_custom_call.1} parent=1 // pred_region
      _
    $region9: #{tpu_custom_call.1} parent=1 // pred_fallthru
      _
    // Predicated region
    $region10: #{tpu_custom_call.1} parent=1 // pred_check
      _
    $region11: #{tpu_custom_call.1} parent=1 // pred_check_branch
      %17 = sbr.rel (0) target = $region13
    $region12: #{tpu_custom_call.1} parent=1 // pred_region
      _
    $region13: #{tpu_custom_call.1} parent=1 // pred_fallthru
      _
    // Predicated region
    $region14: #{tpu_custom_call.1} parent=1 // pred_check
      _
    $region15: #{tpu_custom_call.1} parent=1 // pred_check_branch
      %19 = sbr.rel (0) target = $region17
    $region16: #{tpu_custom_call.1} parent=1 // pred_region
      _
    $region17: #{tpu_custom_call.1} parent=1 // pred_fallthru
      _
    // Predicated region
    $region18: #{tpu_custom_call.1} parent=1 // pred_check
      _
    $region19: #{tpu_custom_call.1} parent=1 // pred_check_branch
      %21 = sbr.rel (0) target = $region21
    $region20: #{tpu_custom_call.1} parent=1 // pred_region
      _
    $region21: #{tpu_custom_call.1} parent=1 // pred_fallthru
      _
    // Predicated region
    $region22: #{tpu_custom_call.1} parent=1 // pred_check
      _
    $region23: #{tpu_custom_call.1} parent=1 // pred_check_branch
      %23 = sbr.rel (0) target = $region25
    $region24: #{tpu_custom_call.1} parent=1 // pred_region
      _
    $region25: #{tpu_custom_call.1} parent=1 // pred_fallthru
      _
    %v24 = vld [vmem:[%s0] sm:$0xff]
    %v25 = vld [vmem:[%s0 + $0x8] sm:$0xff]
    %v26 = vmul.f32 %v24, %v24
    %v27 = vmul.f32 %v25, %v25
    %v28 = vld [vmem:[%s0 + $0x10] sm:$0xff]
    %v29 = vld [vmem:[%s0 + $0x18] sm:$0xff]
    %v30 = vadd.f32 %v24, %v28
    %v31 = vadd.f32 %v25, %v29
    %v32 = vmul.f32 %v28, %v28
    %v33 = vmul.f32 %v29, %v29
    %v34 = vadd.f32 %v26, %v32
    %v35 = vadd.f32 %v27, %v33
    %v36 = vld [vmem:[%s0 + $0x20] sm:$0xff]
    %v37 = vld [vmem:[%s0 + $0x28] sm:$0xff]
    %v38 = vadd.f32 %v30, %v36
    %v39 = vadd.f32 %v31, %v37
    %v40 = vmul.f32 %v36, %v36
    %v41 = vmul.f32 %v37, %v37
    %v42 = vadd.f32 %v34, %v40
    %v43 = vadd.f32 %v35, %v41
    %v44 = vld [vmem:[%s0 + $0x30] sm:$0xff]
    %v45 = vld [vmem:[%s0 + $0x38] sm:$0xff]
    %v46 = vadd.f32 %v38, %v44
    %v47 = vadd.f32 %v39, %v45
    %v48 = vmul.f32 %v44, %v44
    %v49 = vmul.f32 %v45, %v45
    %v50 = vadd.f32 %v42, %v48
    %v51 = vadd.f32 %v43, %v49
    %v52 = vmul.f32 %v46, %v46
    %v53 = vmul.f32 %v47, %v47
    %v54 = vsub.f32 %v52, %v50
    %v55 = vsub.f32 %v53, %v51
    %v56 = vmul.f32 %v54, 0.5
    %v57 = vmul.f32 %v55, 0.5
    %v58 = vld [vmem:[%s1] sm:$0xff]
    %v59 = vld [vmem:[%s1 + $0x8] sm:$0xff]
    %v60 = vld [vmem:[%s1 + $0x10] sm:$0xff]
    %v61 = vld [vmem:[%s1 + $0x18] sm:$0xff]
    %v62 = vld [vmem:[%s2] sm:$0xff]
    %v63 = vld [vmem:[%s2 + $0x8] sm:$0xff]
    %v64 = vld [vmem:[%s2 + $0x10] sm:$0xff]
    %v65 = vld [vmem:[%s2 + $0x18] sm:$0xff]
    %67 = vset.pattern.permute.xlu0 0
    %68 = vperm.xlu0 %67, %v62
    %v69 = vpop.permute.xlu0 %68
    %72 = vset.pattern.permute.xlu0 0
    %73 = vperm.xlu0 %72, %v63
    %v74 = vpop.permute.xlu0 %73
    %77 = vset.pattern.permute.xlu0 0
    %78 = vperm.xlu0 %77, %v64
    %v79 = vpop.permute.xlu0 %78
    %82 = vset.pattern.permute.xlu0 0
    %83 = vperm.xlu0 %82, %v65
    %v84 = vpop.permute.xlu0 %83
    %vm86 = vcmask 130048
    %v88 = vsel %vm86, %v58, 0
    %v91 = vsel %vm86, %v59, 0
    %v94 = vsel %vm86, %v60, 0
    %v97 = vsel %vm86, %v61, 0
    %99 = vmatprep.subr.mxu0 0.0
    %100 = vmatpush1.msra.mxu0 %v56
    %101 = vmatprep.subr.mxu0 0.0
    %102 = vmatpush1.msra.mxu0 %v57
    %103 = vmatprep.subr.mxu0 0.0
    %104 = vmatpush1.msra.mxu0 0.0
    %105 = vmatprep.subr.mxu0 0.0
    %106 = vmatpush1.msra.mxu0 0.0
    %107 = vmatprep.subr.mxu0 0.0
    %108 = vmatpush1.msra.mxu0 0.0
    %109 = vmatprep.subr.mxu0 0.0
    %110 = vmatpush1.msra.mxu0 0.0
    %111 = vmatprep.subr.mxu0 0.0
    %112 = vmatpush1.msra.mxu0 0.0
    %113 = vmatprep.subr.mxu0 0.0
    %114 = vmatpush1.msra.mxu0 0.0
    %115 = vmatprep.subr.mxu0 0.0
    %116 = vmatpush1.msra.mxu0 0.0
    %117 = vmatprep.subr.mxu0 0.0
    %118 = vmatpush1.msra.mxu0 0.0
    %119 = vmatprep.subr.mxu0 0.0
    %120 = vmatpush1.msra.mxu0 0.0
    %121 = vmatprep.subr.mxu0 0.0
    %122 = vmatpush1.msra.mxu0 0.0
    %123 = vmatprep.subr.mxu0 0.0
    %124 = vmatpush1.msra.mxu0 0.0
    %125 = vmatprep.subr.mxu0 0.0
    %126 = vmatpush1.msra.mxu0 0.0
    %127 = vmatprep.subr.mxu0 0.0
    %128 = vmatpush1.msra.mxu0 0.0
    %129 = vmatprep.subr.mxu0 0.0
    %130 = vmatpush1.msra.mxu0 0.0
    %131 = vmatprep.subr.mxu0 0.0
    %132 = vmatpush1.msra.mxu0 0.0
    %133 = vmatprep.subr.mxu0 0.0
    %134 = vmatpush1.msra.mxu0 0.0
    %135 = vmatprep.subr.mxu0 0.0
    %136 = vmatpush1.msra.mxu0 0.0
    %137 = vmatprep.subr.mxu0 0.0
    %138 = vmatpush1.msra.mxu0 0.0
    %139 = vmatprep.subr.mxu0 0.0
    %140 = vmatpush1.msra.mxu0 0.0
    %141 = vmatprep.subr.mxu0 0.0
    %142 = vmatpush1.msra.mxu0 0.0
    %143 = vmatprep.subr.mxu0 0.0
    %144 = vmatpush1.msra.mxu0 0.0
    %145 = vmatprep.subr.mxu0 0.0
    %146 = vmatpush1.msra.mxu0 0.0
    %147 = vmatprep.subr.mxu0 0.0
    %148 = vmatpush1.msra.mxu0 0.0
    %149 = vmatprep.subr.mxu0 0.0
    %150 = vmatpush1.msra.mxu0 0.0
    %151 = vmatprep.subr.mxu0 0.0
    %152 = vmatpush1.msra.mxu0 0.0
    %153 = vmatprep.subr.mxu0 0.0
    %154 = vmatpush1.msra.mxu0 0.0
    %155 = vmatprep.subr.mxu0 0.0
    %156 = vmatpush1.msra.mxu0 0.0
    %157 = vmatprep.subr.mxu0 0.0
    %158 = vmatpush1.msra.mxu0 0.0
    %159 = vmatprep.subr.mxu0 0.0
    %160 = vmatpush1.msra.mxu0 0.0
    %161 = vmatprep.subr.mxu0 0.0
    %162 = vmatpush1.msra.mxu0 0.0
    %163 = vmatprep.mubr.f32.mxu0 0.0
    %164 = vmatmul.mubr.f32.gmra.mrb[0].mxu0 %v88
    %v165 = vpop.f32.mrb[0].mxu0
    %v166 = vadd.f32 %v69, %v165
    %v167 = vpop.f32.mrb[0].mxu0
    %168 = vmatprep.mubr.f32.mxu0 0.0
    %169 = vmatmul.mubr.f32.gmra.mrb[0].mxu0 %v91
    %v170 = vpop.f32.mrb[0].mxu0
    %v171 = vadd.f32 %v74, %v170
    %v172 = vpop.f32.mrb[0].mxu0
    %173 = vmatprep.mubr.f32.mxu0 0.0
    %174 = vmatmul.mubr.f32.gmra.mrb[0].mxu0 %v94
    %v175 = vpop.f32.mrb[0].mxu0
    %v176 = vadd.f32 %v79, %v175
    %v177 = vpop.f32.mrb[0].mxu0
    %178 = vmatprep.mubr.f32.mxu0 0.0
    %179 = vmatmul.mubr.f32.gmra.mrb[0].mxu0 %v97
    %v180 = vpop.f32.mrb[0].mxu0
    %v181 = vadd.f32 %v84, %v180
    %v182 = vpop.f32.mrb[0].mxu0
    %183 = vdwg.mxu0
    %v184 = vmax.f32 %v166, 0.0
    %v185 = vmax.f32 %v171, 0.0
    %v186 = vmax.f32 %v176, 0.0
    %v187 = vmax.f32 %v181, 0.0
    %v188 = vld [vmem:[%s3] sm:$0xff]
    %v189 = vld [vmem:[%s3 + $0x8] sm:$0xff]
    %v190 = vld [vmem:[%s4] sm:$0xff]
    %v191 = vld [vmem:[%s4 + $0x8] sm:$0xff]
    %193 = vset.pattern.permute.xlu0 0
    %194 = vperm.xlu0 %193, %v190
    %v195 = vpop.permute.xlu0 %194
    %198 = vset.pattern.permute.xlu0 0
    %199 = vperm.xlu0 %198, %v191
    %v200 = vpop.permute.xlu0 %199
    %vm202 = vcmask 261120
    %v204 = vsel %vm202, %v188, 0
    %v207 = vsel %vm202, %v189, 0
    %209 = vmatprep.subr.mxu0 0.0
    %210 = vmatpush1.msra.mxu0 %v184
    %211 = vmatprep.subr.mxu0 0.0
    %212 = vmatpush1.msra.mxu0 %v185
    %213 = vmatprep.subr.mxu0 0.0
    %214 = vmatpush1.msra.mxu0 %v186
    %215 = vmatprep.subr.mxu0 0.0
    %216 = vmatpush1.msra.mxu0 %v187
    %217 = vmatprep.subr.mxu0 0.0
    %218 = vmatpush1.msra.mxu0 0.0
    %219 = vmatprep.subr.mxu0 0.0
    %220 = vmatpush1.msra.mxu0 0.0
    %221 = vmatprep.subr.mxu0 0.0
    %222 = vmatpush1.msra.mxu0 0.0
    %223 = vmatprep.subr.mxu0 0.0
    %224 = vmatpush1.msra.mxu0 0.0
    %225 = vmatprep.subr.mxu0 0.0
    %226 = vmatpush1.msra.mxu0 0.0
    %227 = vmatprep.subr.mxu0 0.0
    %228 = vmatpush1.msra.mxu0 0.0
    %229 = vmatprep.subr.mxu0 0.0
    %230 = vmatpush1.msra.mxu0 0.0
    %231 = vmatprep.subr.mxu0 0.0
    %232 = vmatpush1.msra.mxu0 0.0
    %233 = vmatprep.subr.mxu0 0.0
    %234 = vmatpush1.msra.mxu0 0.0
    %235 = vmatprep.subr.mxu0 0.0
    %236 = vmatpush1.msra.mxu0 0.0
    %237 = vmatprep.subr.mxu0 0.0
    %238 = vmatpush1.msra.mxu0 0.0
    %239 = vmatprep.subr.mxu0 0.0
    %240 = vmatpush1.msra.mxu0 0.0
    %241 = vmatprep.subr.mxu0 0.0
    %242 = vmatpush1.msra.mxu0 0.0
    %243 = vmatprep.subr.mxu0 0.0
    %244 = vmatpush1.msra.mxu0 0.0
    %245 = vmatprep.subr.mxu0 0.0
    %246 = vmatpush1.msra.mxu0 0.0
    %247 = vmatprep.subr.mxu0 0.0
    %248 = vmatpush1.msra.mxu0 0.0
    %249 = vmatprep.subr.mxu0 0.0
    %250 = vmatpush1.msra.mxu0 0.0
    %251 = vmatprep.subr.mxu0 0.0
    %252 = vmatpush1.msra.mxu0 0.0
    %253 = vmatprep.subr.mxu0 0.0
    %254 = vmatpush1.msra.mxu0 0.0
    %255 = vmatprep.subr.mxu0 0.0
    %256 = vmatpush1.msra.mxu0 0.0
    %257 = vmatprep.subr.mxu0 0.0
    %258 = vmatpush1.msra.mxu0 0.0
    %259 = vmatprep.subr.mxu0 0.0
    %260 = vmatpush1.msra.mxu0 0.0
    %261 = vmatprep.subr.mxu0 0.0
    %262 = vmatpush1.msra.mxu0 0.0
    %263 = vmatprep.subr.mxu0 0.0
    %264 = vmatpush1.msra.mxu0 0.0
    %265 = vmatprep.subr.mxu0 0.0
    %266 = vmatpush1.msra.mxu0 0.0
    %267 = vmatprep.subr.mxu0 0.0
    %268 = vmatpush1.msra.mxu0 0.0
    %269 = vmatprep.subr.mxu0 0.0
    %270 = vmatpush1.msra.mxu0 0.0
    %271 = vmatprep.subr.mxu0 0.0
    %272 = vmatpush1.msra.mxu0 0.0
    %273 = vmatprep.mubr.f32.mxu0 0.0
    %274 = vmatmul.mubr.f32.gmra.mrb[0].mxu0 %v204
    %v275 = vpop.f32.mrb[0].mxu0
    %v276 = vadd.f32 %v195, %v275
    %v277 = vpop.f32.mrb[0].mxu0
    %278 = vmatprep.mubr.f32.mxu0 0.0
    %279 = vmatmul.mubr.f32.gmra.mrb[0].mxu0 %v207
    %v280 = vpop.f32.mrb[0].mxu0
    %v281 = vadd.f32 %v200, %v280
    %v282 = vpop.f32.mrb[0].mxu0
    %283 = vdwg.mxu0
    %v284 = vmax.f32 %v276, 0.0
    %v285 = vmax.f32 %v281, 0.0
    %v286 = vld [vmem:[%s5] sm:$0xff]
    %v287 = vld [vmem:[%s5 + $0x8] sm:$0xff]
    %289 = vset.pattern.permute.xlu0 0
    %290 = vperm.xlu0 %289, %v286
    %v291 = vpop.permute.xlu0 %290
    %294 = vset.pattern.permute.xlu0 0
    %295 = vperm.xlu0 %294, %v287
    %v296 = vpop.permute.xlu0 %295
    %v298 = vmul.f32 %v284, %v291
    %v299 = vmul.f32 %v285, %v296
    %v300 = vadd.f32 %v298, %v299
    %v301 = vrot.slane %v300, 4
    %v302 = vadd.f32 %v300, %v301
    %v303 = vrot.slane %v302, 2
    %v304 = vadd.f32 %v302, %v303
    %v305 = vrot.slane %v304, 1
    %v306 = vadd.f32 %v304, %v305
    %v307 = vld [vmem:[%s0 + $0x40] sm:$0x1]
    %v308 = vadd.f32 %v307, %v306
    %v309 = vxor.u32 %v308, 2147483648
    %v310 = vmul.f32 %v309, 1.442695
    %v311 = vpow.pop %v310
    %v312 = vadd.f32 %v311, 1.0
    %v313 = vrcp.pop %v312
    %v314 = vmul.f32 1.0, %v313
    %315 = vst [vmem:[#allocation2] sm:$0x1] %v314
    // Predicated region
    $region26: #{tpu_custom_call.1} parent=1 // pred_check
      _
    $region27: #{tpu_custom_call.1} parent=1 // pred_check_branch
      %317 = sbr.rel (0) target = $region29
    $region28: #{tpu_custom_call.1} parent=1 // pred_region
      %s319 = ssub.s32 16, 16
      %320 = vsyncadd [#allocation3], %s319
      %s322 = sshll.u32 [#allocation2], 4
      %s323 = int_to_ptr.vmem [resolvable:$true] %s322
      %325 = dma.vmem_to_hbm [thread:$0]  %s323, 16, %s6, [#allocation3]
    $region29: #{tpu_custom_call.1} parent=1 // pred_fallthru
      _
    // Predicated region
    $region30: #{tpu_custom_call.1} parent=1 // pred_check
      _
    $region31: #{tpu_custom_call.1} parent=1 // pred_check_branch
      %327 = sbr.rel (0) target = $region33
    $region32: #{tpu_custom_call.1} parent=1 // pred_region
      %328 = dma.done [#allocation3], 16
    $region33: #{tpu_custom_call.1} parent=1 // pred_fallthru
      _
    %329 = vsyncpa [#allocation3], 1

</llo_original>
